<compile_context>
chip_gen: v5e
topology: v5e:2x2
jax: 0.10.0
libtpu: 0.0.40
codegen_flags: <defaults>
</compile_context>

<pallas_src>
import functools

import jax
import jax.numpy as jnp
from jax.experimental import pallas as pl
from jax.experimental.pallas import tpu as pltpu


def _round_up(x, m):
    return ((x + m - 1) // m) * m


def _chip_kind():
    try:
        return jax.devices()[0].device_kind.lower()
    except Exception:
        return ""


def _num_tensorcores():
    # Only v7x exposes two TensorCores per chip worth splitting the grid over.
    kind = _chip_kind()
    return 2 if ("v7" in kind or "7x" in kind) else 1


def _vmem_capacity_bytes():
    try:
        info = pltpu.get_tpu_info()
        v = getattr(info, "vmem_capacity_bytes", None)
        if v:
            return int(v)
    except Exception:
        pass
    kind = _chip_kind()
    if "v7" in kind or "7x" in kind:
        return 64 * 1024 * 1024
    if "v4" in kind or "v5" in kind or "v6" in kind:
        return 128 * 1024 * 1024
    return 64 * 1024 * 1024          # conservative default if unknown


def _contrastive_loss_kernel(o1_ref, o2_ref, label_ref, out_ref, *,
                             margin, eps, batch, tile_b, chunk_b, n_chunks,
                             tiles_per_core):
    c = pl.program_id(0)             # core / partial-sum index
    j = pl.program_id(1)             # batch-tile index (reduction axis)

    @pl.when(j == 0)
    def _init():
        out_ref[...] = jnp.zeros_like(out_ref)

    # Logical (unclamped) tile index; rows past `batch` are masked below, which
    # also zeroes the contribution of any clamped duplicate tail tile.
    tile_idx = c * tiles_per_core + j
    base_row = tile_idx * tile_b
    row_in_chunk = jax.lax.broadcasted_iota(jnp.int32, (chunk_b, 1), 0)

    def chunk_body(ci, acc):
        r0 = pl.multiple_of(ci * chunk_b, chunk_b)
        o1 = o1_ref[pl.ds(r0, chunk_b), :].astype(jnp.float32)    # (chunk, D)
        o2 = o2_ref[pl.ds(r0, chunk_b), :].astype(jnp.float32)    # (chunk, D)
        diff = o2 - o1
        d = jnp.sum(diff * diff, axis=1, keepdims=True)           # (chunk, 1)
        neg = jnp.maximum(margin - jnp.sqrt(d + eps), 0.0)
        neg = neg * neg                                           # (chunk, 1)

        valid = (base_row + r0 + row_in_chunk) < batch
        d_m = jnp.where(valid, d, 0.0)
        neg_m = jnp.where(valid, neg, 0.0)

        # label*d + (1-label)*neg == label*(d - neg) + neg.  The label row is
        # lane-dense (1, chunk) while d/neg are sublane columns (chunk, 1); a
        # tiny (1,chunk)x(chunk,1) dot bridges the layouts on the idle MXU.
        # The data operand is split into a bf16-exact part plus residual so
        # the sum stays f32-accurate even if the MXU runs bf16 passes
        # (contrastive labels are 0/1, hence bf16-exact themselves).
        lab = label_ref[pl.ds(ci, 1), :]                          # (1, chunk)
        x = d_m - neg_m                                           # (chunk, 1)
        x_hi = x.astype(jnp.bfloat16).astype(jnp.float32)
        x_lo = x - x_hi
        pos = (jnp.dot(lab, x_hi, preferred_element_type=jnp.float32) +
               jnp.dot(lab, x_lo, preferred_element_type=jnp.float32))
        return acc + pos + jnp.sum(neg_m)

    acc = jax.lax.fori_loop(
        0, n_chunks, chunk_body, jnp.zeros((1, 1), jnp.float32),
        unroll=(2 if n_chunks % 2 == 0 else 1))
    out_ref[...] += acc


def contrastive_loss(output1, output2, label, margin, eps=1e-12, *,
                     tile_b=None, chunk_b=None, num_cores=None):
    """Pallas TPU implementation of ContrastiveLoss.forward.

    output1, output2: (B, D) float arrays (f32 or bf16; loaded in native dtype)
    label:            (B,) array (0/1 similar/dissimilar), any numeric dtype
    Returns a scalar float32 loss.
    """
    B, D = output1.shape
    assert output2.shape == (B, D)
    dtype = jnp.dtype(output1.dtype)
    itemsize = dtype.itemsize
    sub = 8 * max(1, 4 // itemsize)        # sublane packing: 8 f32 / 16 bf16
    d_pad = _round_up(D, 128)              # lane-padded feature width in VMEM

    # --- compute chunk: bounds in-kernel f32 temporaries independent of tile_b
    if chunk_b is None:
        chunk_b = (512 * 1024) // (4 * max(D, 1))
        chunk_b = max(sub, min(1024, (chunk_b // sub) * sub))
    else:
        chunk_b = max(sub, (int(chunk_b) // sub) * sub)
    chunk_b = min(chunk_b, _round_up(B, sub))

    # --- DMA tile: as large as the per-chip double-buffer budget allows
    vmem_limit = min(int(_vmem_capacity_bytes() * 3 // 4), 100 * 1024 * 1024)
    compute_reserve = 6 * chunk_b * d_pad * 4          # live f32 chunk temps
    input_budget = max(vmem_limit - compute_reserve - (4 << 20), 4 << 20)
    per_row = 2 * 2 * d_pad * itemsize + 2 * 4         # o1+o2 dbl-buffered + label
    if tile_b is None:
        tile_b = min(input_budget // per_row, 32768)
    tile_b = max(chunk_b, (int(tile_b) // chunk_b) * chunk_b)
    tile_b = min(tile_b, _round_up(B, chunk_b))
    n_chunks = tile_b // chunk_b

    total_tiles = pl.cdiv(B, tile_b)
    if num_cores is None:
        num_cores = _num_tensorcores()
    num_cores = max(1, min(int(num_cores), total_tiles))
    tiles_per_core = pl.cdiv(total_tiles, num_cores)

    # Lane-dense, zero-padded label stream: one dense contiguous DMA per tile.
    b_pad = total_tiles * tile_b
    lab_flat = label.astype(jnp.float32).reshape(B)
    lab_blocks = jnp.pad(lab_flat, (0, b_pad - B)).reshape(
        total_tiles, n_chunks, chunk_b)

    kernel = functools.partial(
        _contrastive_loss_kernel,
        margin=float(margin), eps=float(eps), batch=B,
        tile_b=tile_b, chunk_b=chunk_b, n_chunks=n_chunks,
        tiles_per_core=tiles_per_core)

    def act_map(c, j):
        # Clamp so DMAs never run past the array; the kernel's row mask zeroes
        # any duplicated tail tile.
        t = jnp.minimum(c * tiles_per_core + j, total_tiles - 1)
        return (t, 0)

    def lab_map(c, j):
        t = jnp.minimum(c * tiles_per_core + j, total_tiles - 1)
        return (t, 0, 0)

    if num_cores > 1:
        # Real TensorCore split (v7x).  Plain "parallel" would not change
        # codegen; CORE_PARALLEL shards the leading axis across the two TCs.
        semantics = (getattr(pltpu, "CORE_PARALLEL", "parallel"), "arbitrary")
    else:
        semantics = ("arbitrary", "arbitrary")

    cost = pl.CostEstimate(
        flops=int(3 * B * D + 10 * B),
        transcendentals=int(B),
        bytes_accessed=int(2 * B * D * itemsize + B * 4 + num_cores * 4))

    partial_sums = pl.pallas_call(
        kernel,
        out_shape=jax.ShapeDtypeStruct((num_cores, 1), jnp.float32),
        grid=(num_cores, tiles_per_core),
        in_specs=[
            pl.BlockSpec((tile_b, D), act_map),
            pl.BlockSpec((tile_b, D), act_map),
            pl.BlockSpec((None, n_chunks, chunk_b), lab_map),
        ],
        out_specs=pl.BlockSpec((1, 1), lambda c, j: (c, 0)),
        compiler_params=pltpu.CompilerParams(
            dimension_semantics=semantics,
            vmem_limit_bytes=int(vmem_limit)),
        cost_estimate=cost,
    )(output1, output2, lab_blocks)

    return 0.5 * jnp.sum(partial_sums) / B


def _reference_loss(output1, output2, label, margin, eps=1e-12):
    # Pure-JAX reference mirroring the PyTorch forward (f32 math).
    o1 = output1.astype(jnp.float32)
    o2 = output2.astype(jnp.float32)
    lab = label.astype(jnp.float32).reshape(-1)
    distances = jnp.sum((o2 - o1) ** 2, axis=1)
    distance_negative = jnp.maximum(margin - jnp.sqrt(distances + eps), 0.0) ** 2
    return 0.5 * jnp.mean(lab * distances + (1.0 - lab) * distance_negative)


if __name__ == "__main__":
    key = jax.random.PRNGKey(0)
    margin = 1.0
    k1, k2, k3, k4, k5, k6 = jax.random.split(key, 6)

    # Case 1: small f32 pair, auto tile/chunk sizing (single tile, single chunk).
    B, D = 8, 32
    o1 = jax.random.normal(k1, (B, D), dtype=jnp.float32)
    o2 = jax.random.normal(k2, (B, D), dtype=jnp.float32)
    lab = jax.random.bernoulli(k3, 0.5, (B,)).astype(jnp.int32)

    loss = jax.block_until_ready(contrastive_loss(o1, o2, lab, margin))
    ref = _reference_loss(o1, o2, lab, margin)
    assert jnp.allclose(loss, ref, atol=1e-4, rtol=1e-4), (loss, ref)

    # Case 2: bf16 inputs, ragged batch, multiple tiles and in-kernel chunks
    # (exercises pipelining, the chunked fori_loop, tail-row masking and the
    # native-dtype load path).
    B2, D2 = 50, 96
    o1b = jax.random.normal(k4, (B2, D2), dtype=jnp.bfloat16)
    o2b = jax.random.normal(k5, (B2, D2), dtype=jnp.bfloat16)
    labb = jax.random.bernoulli(k6, 0.5, (B2,)).astype(jnp.int32)

    loss2 = jax.block_until_ready(
        contrastive_loss(o1b, o2b, labb, margin, tile_b=32, chunk_b=16))
    ref2 = _reference_loss(o1b, o2b, labb, margin)
    assert jnp.allclose(loss2, ref2, atol=1e-3, rtol=1e-3), (loss2, ref2)

    print("KERNEL_OK")
</pallas_src>

<mosaic_0001>
module attributes {stable_mosaic.version = 11 : i64} {
  func.func @_contrastive_loss_kernel(%arg0: i32, %arg1: i32, %arg2: memref<8x32xf32, #tpu.memory_space<vmem>>, %arg3: memref<8x32xf32, #tpu.memory_space<vmem>>, %arg4: memref<1x1x8xf32, #tpu.memory_space<vmem>>, %arg5: memref<1x1xf32, #tpu.memory_space<vmem>>) attributes {dimension_semantics = [#tpu.dimension_semantics<arbitrary>, #tpu.dimension_semantics<arbitrary>], iteration_bounds = array<i64: 1, 1>, scalar_prefetch = 0 : i64, scratch_operands = 0 : i64, tpu.core_type = #tpu.core_type<tc>, window_params = [{transform_indices = @transform_0, window_bounds = array<i64: 8, 32>}, {transform_indices = @transform_1, window_bounds = array<i64: 8, 32>}, {transform_indices = @transform_2, window_bounds = array<i64: 1, 1, 8>}, {transform_indices = @transform_3, window_bounds = array<i64: 1, 1>}]} {
    %c0_i32 = arith.constant 0 : i32
    %0 = arith.cmpi eq, %arg1, %c0_i32 : i32
    %1 = arith.extui %0 : i1 to i32
    %c0_i32_0 = arith.constant 0 : i32
    %2 = arith.cmpi ne, %1, %c0_i32_0 : i32
    scf.if %2 {
      %cst_21 = arith.constant 0.000000e+00 : f32
      %55 = vector.broadcast %cst_21 : f32 to vector<1x1xf32>
      %c0_22 = arith.constant 0 : index
      %c0_23 = arith.constant 0 : index
      %56 = vector.load %arg5[%c0_22, %c0_23] : memref<1x1xf32, #tpu.memory_space<vmem>>, vector<1x1xf32>
      tpu.vector_store %arg5[%c0_22, %c0_23], %55 {strides = array<i32>} : memref<1x1xf32, #tpu.memory_space<vmem>>, vector<1x1xf32>,
    } else {
    }
    %c1_i32 = arith.constant 1 : i32
    %3 = arith.muli %arg0, %c1_i32 : i32
    %4 = arith.addi %3, %arg1 : i32
    %c8_i32 = arith.constant 8 : i32
    %5 = arith.muli %4, %c8_i32 : i32
    %6 = tpu.iota {dimensions = array<i32: 0>} : vector<8x1xi32>
    %cst = arith.constant 0.000000e+00 : f32
    %7 = vector.broadcast %cst : f32 to vector<1x1xf32>
    %c0_i32_1 = arith.constant 0 : i32
    %c8_i32_2 = arith.constant 8 : i32
    %8 = arith.muli %c0_i32_1, %c8_i32_2 : i32
    %9 = tpu.assume_multiple %8, 8 : i32
    %10 = arith.index_cast %9 : i32 to index
    %c0 = arith.constant 0 : index
    %11 = vector.load %arg2[%10, %c0] : memref<8x32xf32, #tpu.memory_space<vmem>>, vector<8x32xf32>
    %12 = arith.index_cast %9 : i32 to index
    %c0_3 = arith.constant 0 : index
    %13 = vector.load %arg3[%12, %c0_3] : memref<8x32xf32, #tpu.memory_space<vmem>>, vector<8x32xf32>
    %14 = arith.subf %13, %11 : vector<8x32xf32>
    %15 = arith.mulf %14, %14 : vector<8x32xf32>
    %cst_4 = arith.constant dense<0.000000e+00> : vector<8xf32>
    %16 = vector.multi_reduction <add>, %15, %cst_4 [1] : vector<8x32xf32> to vector<8xf32>
    %17 = vector.shape_cast %16 : vector<8xf32> to vector<8x1xf32>
    %cst_5 = arith.constant 9.99999996E-13 : f32
    %18 = vector.broadcast %cst_5 : f32 to vector<8x1xf32>
    %19 = arith.addf %17, %18 : vector<8x1xf32>
    %20 = math.sqrt %19 : vector<8x1xf32>
    %cst_6 = arith.constant 1.000000e+00 : f32
    %21 = vector.broadcast %cst_6 : f32 to vector<8x1xf32>
    %22 = arith.subf %21, %20 : vector<8x1xf32>
    %cst_7 = arith.constant 0.000000e+00 : f32
    %23 = vector.broadcast %cst_7 : f32 to vector<8x1xf32>
    %24 = arith.maximumf %22, %23 : vector<8x1xf32>
    %25 = arith.mulf %24, %24 : vector<8x1xf32>
    %26 = arith.addi %5, %9 : i32
    %27 = vector.broadcast %26 : i32 to vector<8x1xi32>
    %28 = arith.addi %27, %6 : vector<8x1xi32>
    %c8_i32_8 = arith.constant 8 : i32
    %29 = vector.broadcast %c8_i32_8 : i32 to vector<8x1xi32>
    %30 = arith.cmpi slt, %28, %29 : vector<8x1xi32>
    %cst_9 = arith.constant 0.000000e+00 : f32
    %31 = vector.broadcast %cst_9 : f32 to vector<8x1xf32>
    %32 = arith.select %30, %17, %31 : vector<8x1xi1>, vector<8x1xf32>
    %cst_10 = arith.constant 0.000000e+00 : f32
    %33 = vector.broadcast %cst_10 : f32 to vector<8x1xf32>
    %34 = arith.select %30, %25, %33 : vector<8x1xi1>, vector<8x1xf32>
    %c0_11 = arith.constant 0 : index
    %35 = arith.index_cast %c0_i32_1 : i32 to index
    %c0_12 = arith.constant 0 : index
    %36 = vector.load %arg4[%c0_11, %35, %c0_12] : memref<1x1x8xf32, #tpu.memory_space<vmem>>, vector<1x1x8xf32>
    %37 = vector.shape_cast %36 : vector<1x1x8xf32> to vector<1x8xf32>
    %38 = arith.subf %32, %34 : vector<8x1xf32>
    %39 = arith.truncf %38 : vector<8x1xf32> to vector<8x1xbf16>
    %40 = arith.extf %39 : vector<8x1xbf16> to vector<8x1xf32>
    %41 = arith.subf %38, %40 : vector<8x1xf32>
    %cst_13 = arith.constant dense<0.000000e+00> : vector<1x1xf32>
    %42 = tpu.matmul %37, %40, %cst_13 {dimension_numbers = #tpu.dot_dimension_numbers<[1], [0], [0], [1], [0, 0, 1, 1], [], []>} : vector<1x8xf32>, vector<8x1xf32>, vector<1x1xf32> -> vector<1x1xf32>
    %cst_14 = arith.constant dense<0.000000e+00> : vector<1x1xf32>
    %43 = tpu.matmul %37, %41, %cst_14 {dimension_numbers = #tpu.dot_dimension_numbers<[1], [0], [0], [1], [0, 0, 1, 1], [], []>} : vector<1x8xf32>, vector<8x1xf32>, vector<1x1xf32> -> vector<1x1xf32>
    %44 = arith.addf %42, %43 : vector<1x1xf32>
    %45 = arith.addf %7, %44 : vector<1x1xf32>
    %46 = vector.shape_cast %34 : vector<8x1xf32> to vector<1x8x1xf32>
    %cst_15 = arith.constant dense<0.000000e+00> : vector<1xf32>
    %47 = vector.multi_reduction <add>, %46, %cst_15 [1, 2] : vector<1x8x1xf32> to vector<1xf32>
    %48 = vector.shape_cast %47 : vector<1xf32> to vector<1x1x1xf32>
    %49 = vector.extract %48[0, 0, 0] : f32 from vector<1x1x1xf32>
    %50 = vector.broadcast %49 : f32 to vector<1x1xf32>
    %51 = arith.addf %45, %50 : vector<1x1xf32>
    %c1_i32_16 = arith.constant 1 : i32
    %c0_17 = arith.constant 0 : index
    %c0_18 = arith.constant 0 : index
    %52 = vector.load %arg5[%c0_17, %c0_18] : memref<1x1xf32, #tpu.memory_space<vmem>>, vector<1x1xf32>
    %53 = arith.addf %52, %51 : vector<1x1xf32>
    %c0_19 = arith.constant 0 : index
    %c0_20 = arith.constant 0 : index
    %54 = vector.load %arg5[%c0_19, %c0_20] : memref<1x1xf32, #tpu.memory_space<vmem>>, vector<1x1xf32>
    tpu.vector_store %arg5[%c0_19, %c0_20], %53 {strides = array<i32>} : memref<1x1xf32, #tpu.memory_space<vmem>>, vector<1x1xf32>,
    return
  }
  func.func @transform_0(%arg0: i32, %arg1: i32) -> (i32, i32) {
    %c1_i32 = arith.constant 1 : i32
    %0 = arith.muli %arg0, %c1_i32 : i32
    %1 = arith.addi %0, %arg1 : i32
    %c0_i32 = arith.constant 0 : i32
    %2 = arith.minsi %1, %c0_i32 : i32
    %c0_i32_0 = arith.constant 0 : i32
    %c0_i32_1 = arith.constant 0 : i32
    return %2, %c0_i32_0 : i32, i32
  }
  func.func @transform_1(%arg0: i32, %arg1: i32) -> (i32, i32) {
    %c1_i32 = arith.constant 1 : i32
    %0 = arith.muli %arg0, %c1_i32 : i32
    %1 = arith.addi %0, %arg1 : i32
    %c0_i32 = arith.constant 0 : i32
    %2 = arith.minsi %1, %c0_i32 : i32
    %c0_i32_0 = arith.constant 0 : i32
    %c0_i32_1 = arith.constant 0 : i32
    return %2, %c0_i32_0 : i32, i32
  }
  func.func @transform_2(%arg0: i32, %arg1: i32) -> (i32, i32, i32) {
    %c1_i32 = arith.constant 1 : i32
    %0 = arith.muli %arg0, %c1_i32 : i32
    %1 = arith.addi %0, %arg1 : i32
    %c0_i32 = arith.constant 0 : i32
    %2 = arith.minsi %1, %c0_i32 : i32
    %c0_i32_0 = arith.constant 0 : i32
    %c0_i32_1 = arith.constant 0 : i32
    %c0_i32_2 = arith.constant 0 : i32
    return %2, %c0_i32_0, %c0_i32_1 : i32, i32, i32
  }
  func.func @transform_3(%arg0: i32, %arg1: i32) -> (i32, i32) {
    %c0_i32 = arith.constant 0 : i32
    %c0_i32_0 = arith.constant 0 : i32
    return %arg0, %c0_i32 : i32, i32
  }
}

</mosaic_0001>

<llo_original>
// kernel: tpu_custom_call.1
$region0: #{tpu_custom_call.1}
  #allocation0 [shape = 'u32[]', space=smem, size = 0x4, offset = 0x4, fixed_abs, tag = 'smem constant byte address 0x4 - core index']
  #allocation1 [shape = 'u32[72,128]{1,0:T(1,128)}', space=vmem, size = 0x9000, scoped, tag = 'internal scratch']
  %s0 = inlined_call_operand.hbm [shape: f32[8,32], index: 0, kind: input, shape index: {}]
  %s1 = inlined_call_operand.hbm [shape: f32[8,32], index: 1, kind: input, shape index: {}]
  %s2 = inlined_call_operand.vmem [shape: f32[1,1,8], index: 2, kind: input, shape index: {}]
  %s3 = inlined_call_operand.hbm [shape: f32[1,1], index: 3, kind: output, shape index: {}]
  %s4 = sld [smem:[#allocation0]]
  $region34: #{tpu_custom_call.1} parent=0
    _
  %s6 = ssub.s32 1, %s4
  %s7 = scalar_select 0, %s6, %s4
  $region1: #{tpu_custom_call.1} parent=0
    #allocation2 [shape = 'u8[4096]{0}', space=vmem, size = 0x1000, scoped, tag = 'input window, operand 0, single buffered']
    #allocation3 [shape = 's32[1]{0}', space=sflag, size = 0x4, scoped, tag = 'scoped memory for tpu_custom_call.1']
    #allocation4 [shape = 's32[1]{0}', space=sflag, size = 0x4, scoped, tag = 'scoped memory for tpu_custom_call.1']
    #allocation5 [shape = 'u8[4096]{0}', space=vmem, size = 0x1000, scoped, tag = 'input window, operand 1, single buffered']
    #allocation6 [shape = 's32[1]{0}', space=sflag, size = 0x4, scoped, tag = 'scoped memory for tpu_custom_call.1']
    #allocation7 [shape = 'u8[512]{0}', space=vmem, size = 0x400, scoped, tag = 'output window, operand 0, single buffered']
    %8 = vsyncpa [#allocation3], 0
    %9 = vsyncpa [#allocation6], 0
    %10 = vsyncpa [#allocation4], 0
    // Predicated region
    $region2: #{tpu_custom_call.1} parent=1 // pred_check
      _
    $region3: #{tpu_custom_call.1} parent=1 // pred_check_branch
      %12 = sbr.rel (0) target = $region5
    $region4: #{tpu_custom_call.1} parent=1 // pred_region
      %s13 = sadd.s32 0, 0
      %p14 = scmp.lt.s32.totalorder %s13, 0
      %s15 = scalar_select %p14, %s13, 0
      %17 = vsyncadd [#allocation3], 0
      %s18 = smul.addr %s15, 8
      %s19 = scalar_lea.hbm %s0, %s18
      %s21 = sshll.u32 %s19, 4
      %s22 = int_to_ptr.hbm [resolvable:$true] %s21
      %s23 = sshll.u32 [#allocation2], 4
      %s24 = int_to_ptr.vmem [resolvable:$true] %s23
      %26 = dma.hbm_to_vmem [thread:$0]  %s22, 128, %s24, [#allocation3]
    $region5: #{tpu_custom_call.1} parent=1 // pred_fallthru
      _
    // Predicated region
    $region6: #{tpu_custom_call.1} parent=1 // pred_check
      _
    $region7: #{tpu_custom_call.1} parent=1 // pred_check_branch
      %28 = sbr.rel (0) target = $region9
    $region8: #{tpu_custom_call.1} parent=1 // pred_region
      %s29 = sadd.s32 0, 0
      %p30 = scmp.lt.s32.totalorder %s29, 0
      %s31 = scalar_select %p30, %s29, 0
      %33 = vsyncadd [#allocation6], 0
      %s34 = smul.addr %s31, 8
      %s35 = scalar_lea.hbm %s1, %s34
      %s37 = sshll.u32 %s35, 4
      %s38 = int_to_ptr.hbm [resolvable:$true] %s37
      %s39 = sshll.u32 [#allocation5], 4
      %s40 = int_to_ptr.vmem [resolvable:$true] %s39
      %42 = dma.hbm_to_vmem [thread:$0]  %s38, 128, %s40, [#allocation6]
    $region9: #{tpu_custom_call.1} parent=1 // pred_fallthru
      _
    // Predicated region
    $region10: #{tpu_custom_call.1} parent=1 // pred_check
      _
    $region11: #{tpu_custom_call.1} parent=1 // pred_check_branch
      %44 = sbr.rel (0) target = $region13
    $region12: #{tpu_custom_call.1} parent=1 // pred_region
      %s45 = sadd.s32 0, 0
      %p46 = scmp.lt.s32.totalorder %s45, 0
      %s47 = scalar_select %p46, %s45, 0
      %p48 = scmp.lt.s32.totalorder %s47, 0
      %s49 = scalar_select %p48, %s47, 0
      %s50 = scalar_lea.vmem %s2, %s49
      %s51 = sadd.s32 0, 0
      %p52 = scmp.lt.s32.totalorder %s51, 0
      %s53 = scalar_select %p52, %s51, 0
    $region13: #{tpu_custom_call.1} parent=1 // pred_fallthru
      _
    // Predicated region
    $region14: #{tpu_custom_call.1} parent=1 // pred_check
      _
    $region15: #{tpu_custom_call.1} parent=1 // pred_check_branch
      %55 = sbr.rel (0) target = $region17
    $region16: #{tpu_custom_call.1} parent=1 // pred_region
      %57 = dma.done [#allocation3], 128
    $region17: #{tpu_custom_call.1} parent=1 // pred_fallthru
      _
    // Predicated region
    $region18: #{tpu_custom_call.1} parent=1 // pred_check
      _
    $region19: #{tpu_custom_call.1} parent=1 // pred_check_branch
      %59 = sbr.rel (0) target = $region21
    $region20: #{tpu_custom_call.1} parent=1 // pred_region
      %61 = dma.done [#allocation6], 128
    $region21: #{tpu_custom_call.1} parent=1 // pred_fallthru
      _
    %s62 = sadd.s32 0, 0
    %p63 = scmp.lt.s32.totalorder %s62, 0
    %s64 = scalar_select %p63, %s62, 0
    %p65 = scmp.lt.s32.totalorder %s64, 0
    %s66 = scalar_select %p65, %s64, 0
    %s67 = scalar_lea.vmem %s2, %s66
    %s68 = sadd.s32 0, 0
    %p69 = scmp.lt.s32.totalorder %s68, 0
    %s70 = scalar_select %p69, %s68, 0
    %s71 = sadd.s32 0, 0
    %p72 = scmp.lt.s32.totalorder %s71, 0
    %s73 = scalar_select %p72, %s71, 0
    %s74 = sadd.s32 0, 0
    %p75 = scmp.lt.s32.totalorder %s74, 0
    %s76 = scalar_select %p75, %s74, 0
    %p77 = scmp.lt.s32.totalorder %s76, 0
    %s78 = scalar_select %p77, %s76, 0
    %s79 = scalar_lea.vmem %s2, %s78
    %s80 = sadd.s32 0, 0
    %p81 = scmp.lt.s32.totalorder %s80, 0
    %s82 = scalar_select %p81, %s80, 0
    %p83 = scmp.eq.s32.totalorder 0, 0
    // Predicated region
    $region22: #{tpu_custom_call.1} parent=1 // pred_check
      %p84 = pneg %p83
    $region23: #{tpu_custom_call.1} parent=1 // pred_check_branch
      %86 = sbr.rel (%p84) target = $region25
    $region24: #{tpu_custom_call.1} parent=1 // pred_region
      %vm87 = vcmask 0
      %88 = vst.msk [vmem:[#allocation7] sm:$0x1] %vm87, 0.0
    $region25: #{tpu_custom_call.1} parent=1 // pred_fallthru
      _
    %s89 = sadd.s32 0, 0
    %s90 = smul.u32 %s89, 8
    %v91 = vlaneseq
    %v92 = vshrl.u32 %v91, 7
    %v93 = vld [vmem:[#allocation2] sm:$0xff]
    %v94 = vld [vmem:[#allocation5] sm:$0xff]
    %v95 = vsub.f32 %v94, %v93
    %v96 = vmul.f32 %v95, %v95
    %vm97 = vcmask 261120
    %v98 = vsel %vm97, %v96, 0.0
    %99 = vadd.xlane.f32.xlu0 %v98
    %v100 = vpop.xlane.xlu0 %99
    %v101 = vadd.f32 %v100, 1e-12
    %v102 = vrsqrt.pop %v101
    %v103 = vmul.f32 %v102, %v101
    %v104 = vmul.f32 %v103, %v102
    %v105 = vmul.f32 0.5, %v104
    %v106 = vsub.f32 1.5, %v105
    %v107 = vmul.f32 %v102, %v106
    %v108 = vmul.f32 %v101, %v107
    %vm109 = vcmp.eq.f32.partialorder %v101, inf
    %v110 = vsel %vm109, %v101, %v108
    %vm111 = vcmp.eq.f32.partialorder %v101, 0.0
    %v112 = vand.u32 %v101, 2147483648
    %v113 = vsel %vm111, %v112, %v110
    %v114 = vsub.f32 1.0, %v113
    %v115 = vmax.f32 %v114, 0.0
    %v116 = vmul.f32 %v115, %v115
    %s117 = sadd.s32 %s90, 0
    %v118 = vstv %s117
    %v119 = vadd.s32 %v118, %v92
    %vm120 = vcmp.lt.s32.totalorder %v119, 8
    %v121 = vsel %vm120, %v100, 0.0
    %v122 = vsel %vm120, %v116, 0.0
    %v123 = vld [vmem:[%s79] sm:$0x1]
    %v124 = vsub.f32 %v121, %v122
    %v125 = vpack.c.bf16 %v124, %v124
    %v126 = vunpack.c.l.bf16 %v125
    %v127 = vsub.f32 %v124, %v126
    %vm128 = vcmask 64512
    %v130 = vsel %vm128, %v123, 0
    %132 = vmatpush.msra.mxu0 0.0
    %133 = vmatpush.msra.mxu0 0.0
    %134 = vmatpush.msra.mxu0 0.0
    %135 = vmatpush.msra.mxu0 0.0
    %136 = vmatpush.msra.mxu0 0.0
    %137 = vmatpush.msra.mxu0 0.0
    %138 = vmatpush.msra.mxu0 0.0
    %139 = vmatpush.msra.mxu0 0.0
    %140 = vmatpush.msra.mxu0 0.0
    %141 = vmatpush.msra.mxu0 0.0
    %142 = vmatpush.msra.mxu0 0.0
    %143 = vmatpush.msra.mxu0 0.0
    %144 = vmatpush.msra.mxu0 0.0
    %145 = vmatpush.msra.mxu0 0.0
    %146 = vmatpush.msra.mxu0 0.0
    %147 = vmatpush.msra.mxu0 %v127
    %148 = vmatmul.f32.gmra.mxu0 %v130
    %v149 = vpop.f32.mrf.mxu0
    %v150 = vadd.f32 0.0, %v149
    %151 = vdwg.mxu0
    %152 = vmatpush.msra.mxu0 0.0
    %153 = vmatpush.msra.mxu0 0.0
    %154 = vmatpush.msra.mxu0 0.0
    %155 = vmatpush.msra.mxu0 0.0
    %156 = vmatpush.msra.mxu0 0.0
    %157 = vmatpush.msra.mxu0 0.0
    %158 = vmatpush.msra.mxu0 0.0
    %159 = vmatpush.msra.mxu0 0.0
    %160 = vmatpush.msra.mxu0 0.0
    %161 = vmatpush.msra.mxu0 0.0
    %162 = vmatpush.msra.mxu0 0.0
    %163 = vmatpush.msra.mxu0 0.0
    %164 = vmatpush.msra.mxu0 0.0
    %165 = vmatpush.msra.mxu0 0.0
    %166 = vmatpush.msra.mxu0 0.0
    %167 = vmatpush.msra.mxu0 %v126
    %168 = vmatmul.f32.gmra.mxu0 %v130
    %v169 = vpop.f32.mrf.mxu0
    %v170 = vadd.f32 %v150, %v169
    %171 = vdwg.mxu0
    %v172 = vadd.f32 %v170, 0.0
    %vm173 = vcmask 7168
    %v174 = vsel %vm173, %v122, 0.0
    %175 = vadd.xlane.f32.xlu0 %v174
    %v176 = vpop.xlane.xlu0 %175
    %v177 = vrot.slane %v176, 4
    %v178 = vadd.f32 %v176, %v177
    %v179 = vrot.slane %v178, 2
    %v180 = vadd.f32 %v178, %v179
    %v181 = vrot.slane %v180, 1
    %v182 = vadd.f32 %v180, %v181
    %s183 = vtos %v182
    %v184 = vstv %s183
    %v185 = vadd.f32 %v172, %v184
    %v186 = vld [vmem:[#allocation7] sm:$0x1]
    %v187 = vadd.f32 %v186, %v185
    %vm188 = vcmask 0
    %189 = vst.msk [vmem:[#allocation7] sm:$0x1] %vm188, %v187
    // Predicated region
    $region26: #{tpu_custom_call.1} parent=1 // pred_check
      _
    $region27: #{tpu_custom_call.1} parent=1 // pred_check_branch
      %191 = sbr.rel (0) target = $region29
    $region28: #{tpu_custom_call.1} parent=1 // pred_region
      %193 = vsyncadd [#allocation4], 0
      %s195 = sshll.u32 [#allocation7], 4
      %s196 = int_to_ptr.vmem [resolvable:$true] %s195
      %s197 = sshll.u32 %s3, 4
      %s198 = int_to_ptr.hbm [resolvable:$true] %s197
      %200 = dma.vmem_to_hbm [thread:$0]  %s196, 16, %s198, [#allocation4]
    $region29: #{tpu_custom_call.1} parent=1 // pred_fallthru
      _
    // Predicated region
    $region30: #{tpu_custom_call.1} parent=1 // pred_check
      _
    $region31: #{tpu_custom_call.1} parent=1 // pred_check_branch
      %202 = sbr.rel (0) target = $region33
    $region32: #{tpu_custom_call.1} parent=1 // pred_region
      %204 = dma.done [#allocation4], 16
    $region33: #{tpu_custom_call.1} parent=1 // pred_fallthru
      _
    %205 = vsyncpa [#allocation3], 1
    %206 = vsyncpa [#allocation6], 1
    %207 = vsyncpa [#allocation4], 1

</llo_original>
